<compile_context>
chip_gen: v7x
topology: tpu7x:2x2x1
jax: 0.10.0
libtpu: 0.0.40
codegen_flags: <defaults>
</compile_context>

<pallas_src>
import functools

import jax
import jax.numpy as jnp
import numpy as np
from jax.experimental import pallas as pl
from jax.experimental.pallas import tpu as pltpu

# ----------------------------- model config ---------------------------------
SEQ_LEN = 16          # L
PRED_LEN = 8          # P
ENC_IN = 4            # channels
BATCH = 2
DEPTH = 2             # decomposer_depth
KERNEL_SIZE = 5       # trend kernel size
SEASONS = 2
BIAS = True

TILE_M_MAX = 2048          # lane-tile over batch*channels (multiple of 128)
MXU_DTYPE = jnp.bfloat16   # matmul operand dtype (accumulation stays f32)


# ----------------------------- pallas kernel --------------------------------
def sfft_kernel(x_ref, mats_ref, head_ref, b_ref, out_ref, *, depth, seasons):
    # x_ref:    [L, TILE_M] f32   columns = independent (batch, channel) series
    # mats_ref: [depth*seasons + 1, L, L] bf16
    #           [0 .. ds-1] = transposed circulants C^T, [ds] = A = (I - T)^T
    # head_ref: [2, P, L] bf16    [0] = W^T, [1] = W^T @ A  (fused last trend)
    # b_ref:    [P, 1]  f32       prediction head bias (column)
    # out_ref:  [P, TILE_M] f32
    x = x_ref[...]                                          # f32
    seq_mean = jnp.mean(x, axis=0, keepdims=True)           # [1, TILE_M]
    x = x - seq_mean

    ds = depth * seasons
    x_rem_last = x
    for d in range(depth):                                  # static unroll
        x_rem = x
        for s in range(seasons):
            c_t = mats_ref[d * seasons + s]                 # [L, L] bf16
            seasonal = jnp.tanh(
                jnp.dot(c_t, x_rem.astype(MXU_DTYPE),
                        preferred_element_type=jnp.float32))
            x_rem = x_rem - seasonal
        if d < depth - 1:
            # trend removal fused into one matmul: x_rem <- (I - T)^T @ x_rem
            x_rem = jnp.dot(mats_ref[ds], x_rem.astype(MXU_DTYPE),
                            preferred_element_type=jnp.float32)
            x = x - x_rem
        else:
            # last depth: trend matmul is algebraically folded into the head
            x_rem_last = x_rem

    # out = W^T @ (x - A @ x_rem_last) + b + mean
    #     = W^T @ x - (W^T A) @ x_rem_last + b + mean
    out = jnp.dot(head_ref[0], x.astype(MXU_DTYPE),
                  preferred_element_type=jnp.float32)       # [P, TILE_M]
    out = out - jnp.dot(head_ref[1], x_rem_last.astype(MXU_DTYPE),
                        preferred_element_type=jnp.float32)
    out_ref[...] = (out + (b_ref[...] + seq_mean)).astype(out_ref.dtype)


@functools.partial(jax.jit, static_argnames=("depth", "seasons", "pred_len"))
def sfft_forward(x, mats, head, b_col, *, depth, seasons, pred_len):
    """x: [B, L, C] -> [B, C, P]  (matches the PyTorch shared-mode output)."""
    B, L, C = x.shape
    M = B * C
    # cheap major-axis permute; puts the big independent axis M on lanes
    x_t = jnp.transpose(x, (1, 0, 2)).reshape(L, M)

    if M < 128:
        # Small-M fast path: block dims == full array dims, no pad / no slice.
        tile_m = M
        m_pad = M
    else:
        m128 = ((M + 127) // 128) * 128
        tile_m = min(TILE_M_MAX, m128)
        # v7x megacore: guarantee >= 2 parallel grid steps when possible so
        # both TensorCores get work (harmless on single-TC v5e/v6e).
        if m128 >= 256 and tile_m == m128:
            tile_m = ((m128 // 2 + 127) // 128) * 128
        m_pad = pl.cdiv(M, tile_m) * tile_m
        if m_pad != M:
            # zero-fill; every op is column-independent so pad cols stay inert
            x_t = jnp.pad(x_t, ((0, 0), (0, m_pad - M)))

    kernel = functools.partial(sfft_kernel, depth=depth, seasons=seasons)
    out_t = pl.pallas_call(
        kernel,
        out_shape=jax.ShapeDtypeStruct((pred_len, m_pad), jnp.float32),
        grid=(pl.cdiv(m_pad, tile_m),),
        in_specs=[
            # activations: tiled & software-pipelined along the lane (M) axis
            pl.BlockSpec((L, tile_m), lambda i: (0, i)),
            # packed weight slabs: constant index_map -> VMEM resident
            pl.BlockSpec((depth * seasons + 1, L, L), lambda i: (0, 0, 0)),
            pl.BlockSpec((2, pred_len, L), lambda i: (0, 0, 0)),
            pl.BlockSpec((pred_len, 1), lambda i: (0, 0)),
        ],
        out_specs=pl.BlockSpec((pred_len, tile_m), lambda i: (0, i)),
        compiler_params=pltpu.CompilerParams(
            dimension_semantics=("parallel",)),   # sharded over 2 TCs on v7x
    )(x_t, mats, head, b_col)

    if m_pad != M:
        out_t = out_t[:, :M]
    # [P, M] -> [B, C, P]  (PyTorch shared mode returns [B, C, P])
    return out_t.T.reshape(B, C, pred_len)


# ----------------------------- parameter setup (glue) ------------------------
def fourier_basis(n):
    j = np.arange(n).reshape(-1, 1)
    k = np.arange(n).reshape(1, -1)
    return (1.0 / np.sqrt(np.float32(n))) * np.exp(
        -2j * np.pi * j * k / n).astype(np.complex64)


def build_circulant_mats(key, depth, seasons, seq_len):
    """real(F_s^H diag(d) F_s) for every (block, season) -- as in Seasonal."""
    f_full = fourier_basis(seq_len * seasons)
    mats = []
    for _d in range(depth):
        for s in range(seasons):
            key, sub = jax.random.split(key)
            diag = jax.random.uniform(sub, (seq_len,), jnp.float32,
                                      minval=-1.0, maxval=1.0)
            f_s = jnp.asarray(f_full[s * seq_len:(s + 1) * seq_len,
                                     s * seq_len:(s + 1) * seq_len])
            f_inv = jnp.conj(f_s).T
            circ = f_inv @ jnp.diag(diag.astype(jnp.complex64)) @ f_s
            mats.append(jnp.real(circ).astype(jnp.float32))
    return jnp.stack(mats, axis=0), key


def build_trend_matrix(seq_len, kernel_size):
    """[L, L] operator == replicate-front-pad(k-1) + AvgPool1d(k, stride=1)."""
    t = np.zeros((seq_len, seq_len), dtype=np.float32)
    for out_t in range(seq_len):
        for j in range(kernel_size):
            src = max(out_t + j - (kernel_size - 1), 0)
            t[src, out_t] += 1.0 / kernel_size
    return jnp.asarray(t)


def prepare_kernel_params(cmats, tmat, w, b, seq_len, pred_len):
    """Pre-transpose / pre-fuse / pre-pack parameters for the kernel layout."""
    cmats_t = jnp.transpose(cmats, (0, 2, 1))                        # C^T, f32
    a_mat = (jnp.eye(seq_len, dtype=jnp.float32) - tmat).T           # (I-T)^T
    # one bf16 slab: circulants + trend-removal operator
    mats = jnp.concatenate([cmats_t, a_mat[None]], axis=0).astype(MXU_DTYPE)
    w_t = w.T                                                        # [P, L]
    wa = w_t @ a_mat                                                 # W^T (I-T)^T
    # one bf16 slab for the two head matrices
    head = jnp.stack([w_t, wa], axis=0).astype(MXU_DTYPE)            # [2, P, L]
    b_col = b.reshape(pred_len, 1).astype(jnp.float32)               # [P, 1]
    return mats, head, b_col


# ----------------------------- pure-JAX reference ----------------------------
def reference_forward(x, cmats, tmat, w, b, *, depth, seasons):
    """Faithful f32 transcription of the PyTorch Model.forward (shared mode)."""
    xp = jnp.transpose(x, (0, 2, 1))                       # [B, C, L]
    mean = jnp.mean(xp, axis=-1, keepdims=True)
    xc = xp - mean
    for d in range(depth):
        x_rem = xc
        for s in range(seasons):
            x_seasonal = jnp.tanh(x_rem @ cmats[d * seasons + s])
            x_rem = x_rem - x_seasonal
        x_t = x_rem @ tmat
        x_rem = x_rem - x_t
        xc = xc - x_rem
    out = xc @ w + b
    return out + mean                                      # [B, C, P]


# ----------------------------- main ------------------------------------------
if __name__ == "__main__":
    key = jax.random.PRNGKey(0)

    cmats, key = build_circulant_mats(key, DEPTH, SEASONS, SEQ_LEN)
    tmat = build_trend_matrix(SEQ_LEN, KERNEL_SIZE)
    key, kw, kb, kx = jax.random.split(key, 4)
    w = jax.random.normal(kw, (SEQ_LEN, PRED_LEN), jnp.float32) * 0.1
    b = (jax.random.uniform(kb, (PRED_LEN,), jnp.float32)
         if BIAS else jnp.zeros((PRED_LEN,), jnp.float32))

    # model input: [batch, seq_len, channels]
    x = jax.random.normal(kx, (BATCH, SEQ_LEN, ENC_IN), jnp.float32)

    mats, head, b_col = prepare_kernel_params(cmats, tmat, w, b,
                                              SEQ_LEN, PRED_LEN)

    out = sfft_forward(x, mats, head, b_col,
                       depth=DEPTH, seasons=SEASONS, pred_len=PRED_LEN)
    out = jax.block_until_ready(out)

    # correctness vs f32 reference; tolerance covers bf16 matmul operands
    # (f32 accumulation; expected |err| ~1e-2 worst case at these magnitudes).
    ref = reference_forward(x, cmats, tmat, w, b, depth=DEPTH, seasons=SEASONS)
    np.testing.assert_allclose(np.asarray(out), np.asarray(ref),
                               rtol=3e-2, atol=3e-2)

    print("KERNEL_OK")
</pallas_src>

<mosaic_0001>
module attributes {stable_mosaic.version = 11 : i64} {
  func.func @sfft_kernel(%arg0: i32, %arg1: memref<16x8xf32, #tpu.memory_space<vmem>>, %arg2: memref<5x16x16xbf16, #tpu.memory_space<vmem>>, %arg3: memref<2x8x16xbf16, #tpu.memory_space<vmem>>, %arg4: memref<8x1xf32, #tpu.memory_space<vmem>>, %arg5: memref<8x8xf32, #tpu.memory_space<vmem>>) attributes {dimension_semantics = [#tpu.dimension_semantics<parallel>], iteration_bounds = array<i64: 1>, scalar_prefetch = 0 : i64, scratch_operands = 0 : i64, tpu.core_type = #tpu.core_type<tc>, window_params = [{transform_indices = @transform_0, window_bounds = array<i64: 16, 8>}, {pipeline_mode = #tpu.pipeline_mode<synchronous>, transform_indices = @transform_1, window_bounds = array<i64: 5, 16, 16>}, {pipeline_mode = #tpu.pipeline_mode<synchronous>, transform_indices = @transform_2, window_bounds = array<i64: 2, 8, 16>}, {pipeline_mode = #tpu.pipeline_mode<synchronous>, transform_indices = @transform_3, window_bounds = array<i64: 8, 1>}, {transform_indices = @transform_4, window_bounds = array<i64: 8, 8>}]} {
    %c0 = arith.constant 0 : index
    %c0_0 = arith.constant 0 : index
    %0 = vector.load %arg1[%c0, %c0_0] : memref<16x8xf32, #tpu.memory_space<vmem>>, vector<16x8xf32>
    %cst = arith.constant dense<0.000000e+00> : vector<8xf32>
    %1 = vector.multi_reduction <add>, %0, %cst [0] : vector<16x8xf32> to vector<8xf32>
    %2 = vector.shape_cast %1 : vector<8xf32> to vector<1x8xf32>
    %cst_1 = arith.constant 1.600000e+01 : f32
    %3 = vector.broadcast %cst_1 : f32 to vector<1x8xf32>
    %4 = arith.divf %2, %3 : vector<1x8xf32>
    %5 = vector.broadcast %4 : vector<1x8xf32> to vector<16x8xf32>
    %6 = arith.subf %0, %5 : vector<16x8xf32>
    %c0_2 = arith.constant 0 : index
    %c0_3 = arith.constant 0 : index
    %c0_4 = arith.constant 0 : index
    %7 = vector.load %arg2[%c0_2, %c0_3, %c0_4] : memref<5x16x16xbf16, #tpu.memory_space<vmem>>, vector<1x16x16xbf16>
    %8 = vector.shape_cast %7 : vector<1x16x16xbf16> to vector<16x16xbf16>
    %9 = arith.truncf %6 : vector<16x8xf32> to vector<16x8xbf16>
    %cst_5 = arith.constant dense<0.000000e+00> : vector<16x8xf32>
    %10 = tpu.matmul %8, %9, %cst_5 {dimension_numbers = #tpu.dot_dimension_numbers<[1], [0], [0], [1], [0, 0, 1, 1], [], []>} : vector<16x16xbf16>, vector<16x8xbf16>, vector<16x8xf32> -> vector<16x8xf32>
    %11 = math.tanh %10 : vector<16x8xf32>
    %12 = arith.subf %6, %11 : vector<16x8xf32>
    %c1 = arith.constant 1 : index
    %c0_6 = arith.constant 0 : index
    %c0_7 = arith.constant 0 : index
    %13 = vector.load %arg2[%c1, %c0_6, %c0_7] : memref<5x16x16xbf16, #tpu.memory_space<vmem>>, vector<1x16x16xbf16>
    %14 = vector.shape_cast %13 : vector<1x16x16xbf16> to vector<16x16xbf16>
    %15 = arith.truncf %12 : vector<16x8xf32> to vector<16x8xbf16>
    %cst_8 = arith.constant dense<0.000000e+00> : vector<16x8xf32>
    %16 = tpu.matmul %14, %15, %cst_8 {dimension_numbers = #tpu.dot_dimension_numbers<[1], [0], [0], [1], [0, 0, 1, 1], [], []>} : vector<16x16xbf16>, vector<16x8xbf16>, vector<16x8xf32> -> vector<16x8xf32>
    %17 = math.tanh %16 : vector<16x8xf32>
    %18 = arith.subf %12, %17 : vector<16x8xf32>
    %c4 = arith.constant 4 : index
    %c0_9 = arith.constant 0 : index
    %c0_10 = arith.constant 0 : index
    %19 = vector.load %arg2[%c4, %c0_9, %c0_10] : memref<5x16x16xbf16, #tpu.memory_space<vmem>>, vector<1x16x16xbf16>
    %20 = vector.shape_cast %19 : vector<1x16x16xbf16> to vector<16x16xbf16>
    %21 = arith.truncf %18 : vector<16x8xf32> to vector<16x8xbf16>
    %cst_11 = arith.constant dense<0.000000e+00> : vector<16x8xf32>
    %22 = tpu.matmul %20, %21, %cst_11 {dimension_numbers = #tpu.dot_dimension_numbers<[1], [0], [0], [1], [0, 0, 1, 1], [], []>} : vector<16x16xbf16>, vector<16x8xbf16>, vector<16x8xf32> -> vector<16x8xf32>
    %23 = arith.subf %6, %22 : vector<16x8xf32>
    %c2 = arith.constant 2 : index
    %c0_12 = arith.constant 0 : index
    %c0_13 = arith.constant 0 : index
    %24 = vector.load %arg2[%c2, %c0_12, %c0_13] : memref<5x16x16xbf16, #tpu.memory_space<vmem>>, vector<1x16x16xbf16>
    %25 = vector.shape_cast %24 : vector<1x16x16xbf16> to vector<16x16xbf16>
    %26 = arith.truncf %23 : vector<16x8xf32> to vector<16x8xbf16>
    %cst_14 = arith.constant dense<0.000000e+00> : vector<16x8xf32>
    %27 = tpu.matmul %25, %26, %cst_14 {dimension_numbers = #tpu.dot_dimension_numbers<[1], [0], [0], [1], [0, 0, 1, 1], [], []>} : vector<16x16xbf16>, vector<16x8xbf16>, vector<16x8xf32> -> vector<16x8xf32>
    %28 = math.tanh %27 : vector<16x8xf32>
    %29 = arith.subf %23, %28 : vector<16x8xf32>
    %c3 = arith.constant 3 : index
    %c0_15 = arith.constant 0 : index
    %c0_16 = arith.constant 0 : index
    %30 = vector.load %arg2[%c3, %c0_15, %c0_16] : memref<5x16x16xbf16, #tpu.memory_space<vmem>>, vector<1x16x16xbf16>
    %31 = vector.shape_cast %30 : vector<1x16x16xbf16> to vector<16x16xbf16>
    %32 = arith.truncf %29 : vector<16x8xf32> to vector<16x8xbf16>
    %cst_17 = arith.constant dense<0.000000e+00> : vector<16x8xf32>
    %33 = tpu.matmul %31, %32, %cst_17 {dimension_numbers = #tpu.dot_dimension_numbers<[1], [0], [0], [1], [0, 0, 1, 1], [], []>} : vector<16x16xbf16>, vector<16x8xbf16>, vector<16x8xf32> -> vector<16x8xf32>
    %34 = math.tanh %33 : vector<16x8xf32>
    %35 = arith.subf %29, %34 : vector<16x8xf32>
    %c0_18 = arith.constant 0 : index
    %c0_19 = arith.constant 0 : index
    %c0_20 = arith.constant 0 : index
    %36 = vector.load %arg3[%c0_18, %c0_19, %c0_20] : memref<2x8x16xbf16, #tpu.memory_space<vmem>>, vector<1x8x16xbf16>
    %37 = vector.shape_cast %36 : vector<1x8x16xbf16> to vector<8x16xbf16>
    %38 = arith.truncf %23 : vector<16x8xf32> to vector<16x8xbf16>
    %cst_21 = arith.constant dense<0.000000e+00> : vector<8x8xf32>
    %39 = tpu.matmul %37, %38, %cst_21 {dimension_numbers = #tpu.dot_dimension_numbers<[1], [0], [0], [1], [0, 0, 1, 1], [], []>} : vector<8x16xbf16>, vector<16x8xbf16>, vector<8x8xf32> -> vector<8x8xf32>
    %c1_22 = arith.constant 1 : index
    %c0_23 = arith.constant 0 : index
    %c0_24 = arith.constant 0 : index
    %40 = vector.load %arg3[%c1_22, %c0_23, %c0_24] : memref<2x8x16xbf16, #tpu.memory_space<vmem>>, vector<1x8x16xbf16>
    %41 = vector.shape_cast %40 : vector<1x8x16xbf16> to vector<8x16xbf16>
    %42 = arith.truncf %35 : vector<16x8xf32> to vector<16x8xbf16>
    %cst_25 = arith.constant dense<0.000000e+00> : vector<8x8xf32>
    %43 = tpu.matmul %41, %42, %cst_25 {dimension_numbers = #tpu.dot_dimension_numbers<[1], [0], [0], [1], [0, 0, 1, 1], [], []>} : vector<8x16xbf16>, vector<16x8xbf16>, vector<8x8xf32> -> vector<8x8xf32>
    %44 = arith.subf %39, %43 : vector<8x8xf32>
    %c0_26 = arith.constant 0 : index
    %c0_27 = arith.constant 0 : index
    %45 = vector.load %arg4[%c0_26, %c0_27] : memref<8x1xf32, #tpu.memory_space<vmem>>, vector<8x1xf32>
    %46 = vector.broadcast %45 : vector<8x1xf32> to vector<8x8xf32>
    %47 = vector.broadcast %4 : vector<1x8xf32> to vector<8x8xf32>
    %48 = arith.addf %46, %47 : vector<8x8xf32>
    %49 = arith.addf %44, %48 : vector<8x8xf32>
    %c0_28 = arith.constant 0 : index
    %c0_29 = arith.constant 0 : index
    %50 = vector.load %arg5[%c0_28, %c0_29] : memref<8x8xf32, #tpu.memory_space<vmem>>, vector<8x8xf32>
    tpu.vector_store %arg5[%c0_28, %c0_29], %49 {strides = array<i32>} : memref<8x8xf32, #tpu.memory_space<vmem>>, vector<8x8xf32>,
    return
  }
  func.func @transform_0(%arg0: i32) -> (i32, i32) {
    %c0_i32 = arith.constant 0 : i32
    %c0_i32_0 = arith.constant 0 : i32
    return %c0_i32, %arg0 : i32, i32
  }
  func.func @transform_1(%arg0: i32) -> (i32, i32, i32) {
    %c0_i32 = arith.constant 0 : i32
    %c0_i32_0 = arith.constant 0 : i32
    %c0_i32_1 = arith.constant 0 : i32
    %c0_i32_2 = arith.constant 0 : i32
    return %c0_i32, %c0_i32_0, %c0_i32_1 : i32, i32, i32
  }
  func.func @transform_2(%arg0: i32) -> (i32, i32, i32) {
    %c0_i32 = arith.constant 0 : i32
    %c0_i32_0 = arith.constant 0 : i32
    %c0_i32_1 = arith.constant 0 : i32
    %c0_i32_2 = arith.constant 0 : i32
    return %c0_i32, %c0_i32_0, %c0_i32_1 : i32, i32, i32
  }
  func.func @transform_3(%arg0: i32) -> (i32, i32) {
    %c0_i32 = arith.constant 0 : i32
    %c0_i32_0 = arith.constant 0 : i32
    %c0_i32_1 = arith.constant 0 : i32
    return %c0_i32, %c0_i32_0 : i32, i32
  }
  func.func @transform_4(%arg0: i32) -> (i32, i32) {
    %c0_i32 = arith.constant 0 : i32
    %c0_i32_0 = arith.constant 0 : i32
    return %c0_i32, %arg0 : i32, i32
  }
}

</mosaic_0001>

<llo_original>
// kernel: sfft_forward.1
$region0: #{sfft_forward.1}
  #allocation0 [shape = 'u32[]', space=smem, size = 0x4, offset = 0x4, fixed_abs, tag = 'smem constant byte address 0x4 - core index']
  #allocation1 [shape = 'u32[144,128]{1,0:T(1,128)}', space=vmem, size = 0x12000, scoped, tag = 'internal scratch']
  %s0 = inlined_call_operand.vmem [shape: f32[16,8], index: 0, kind: input, shape index: {}]
  %s1 = inlined_call_operand.vmem [shape: bf16[5,16,16], index: 1, kind: input, shape index: {}]
  %s2 = inlined_call_operand.hbm [shape: bf16[2,8,16], index: 2, kind: input, shape index: {}]
  %s3 = inlined_call_operand.vmem [shape: f32[8,1], index: 3, kind: input, shape index: {}]
  %s4 = inlined_call_operand.vmem [shape: f32[8,8], index: 4, kind: output, shape index: {}]
  %s5 = sld [smem:[#allocation0]]
  $region30: #{sfft_forward.1} parent=0
    _
  %s7 = ssub.s32 1, %s5
  %s8 = scalar_select 0, %s7, %s5
  $region1: #{sfft_forward.1} parent=0
    #allocation2 [shape = 'u8[4096]{0}', space=vmem, size = 0x1000, scoped, tag = 'input window, operand 2, single buffered']
    #allocation3 [shape = 's32[1]{0}', space=sflag, size = 0x4, scoped, tag = 'scoped memory for sfft_forward.1']
    %9 = vsyncpa [#allocation3], 0
    // Predicated region
    $region2: #{sfft_forward.1} parent=1 // pred_check
      _
    $region3: #{sfft_forward.1} parent=1 // pred_check_branch
      %11 = sbr.rel (0) target = $region5
    $region4: #{sfft_forward.1} parent=1 // pred_region
      _
    $region5: #{sfft_forward.1} parent=1 // pred_fallthru
      _
    // Predicated region
    $region6: #{sfft_forward.1} parent=1 // pred_check
      _
    $region7: #{sfft_forward.1} parent=1 // pred_check_branch
      %13 = sbr.rel (0) target = $region9
    $region8: #{sfft_forward.1} parent=1 // pred_region
      _
    $region9: #{sfft_forward.1} parent=1 // pred_fallthru
      _
    // Predicated region
    $region10: #{sfft_forward.1} parent=1 // pred_check
      _
    $region11: #{sfft_forward.1} parent=1 // pred_check_branch
      %15 = sbr.rel (0) target = $region13
    $region12: #{sfft_forward.1} parent=1 // pred_region
      %s17 = ssub.s32 128, 128
      %18 = vsyncadd [#allocation3], %s17
      %s19 = sshll.u32 [#allocation2], 4
      %s20 = int_to_ptr.vmem [resolvable:$true] %s19
      %25 = dma.hbm_to_vmem [thread:$0]  %s2, 128, %s20, [#allocation3], 64, 64, 4
    $region13: #{sfft_forward.1} parent=1 // pred_fallthru
      _
    // Predicated region
    $region14: #{sfft_forward.1} parent=1 // pred_check
      _
    $region15: #{sfft_forward.1} parent=1 // pred_check_branch
      %27 = sbr.rel (0) target = $region17
    $region16: #{sfft_forward.1} parent=1 // pred_region
      _
    $region17: #{sfft_forward.1} parent=1 // pred_fallthru
      _
    // Predicated region
    $region18: #{sfft_forward.1} parent=1 // pred_check
      _
    $region19: #{sfft_forward.1} parent=1 // pred_check_branch
      %29 = sbr.rel (0) target = $region21
    $region20: #{sfft_forward.1} parent=1 // pred_region
      %30 = dma.done [#allocation3], 128
    $region21: #{sfft_forward.1} parent=1 // pred_fallthru
      _
    %v32 = vld [vmem:[%s0] sm:$0xff]
    %v33 = vld [vmem:[%s0 + $0x8] sm:$0xff]
    %vm34 = vcmask 64512
    %v35 = vsel %vm34, %v32, 0.0
    %v36 = vsel %vm34, %v33, 0.0
    %v37 = vadd.f32 %v35, %v36
    %v38 = vrot.slane %v37, 4
    %v39 = vadd.f32 %v37, %v38
    %v40 = vrot.slane %v39, 2
    %v41 = vadd.f32 %v39, %v40
    %v42 = vrot.slane %v41, 1
    %v43 = vadd.f32 %v41, %v42
    %v44 = vrcp.pop 16.0
    %v45 = vmul.f32 %v43, %v44
    %v46 = vsub.f32 %v32, %v45
    %v47 = vsub.f32 %v33, %v45
    %v48 = vld [vmem:[%s1] sm:$0xf]
    %v49 = vld [vmem:[%s1 + $0x4] sm:$0xf]
    %v50 = vpack.c.bf16 %v47, %v46
    %v53 = vunpack.c.l.b16 %v48
    %v54 = vunpack.c.l.b16 %v49
    %v55 = vpack.c.b16 %v54, %v53
    %vm56 = vcmask 130048
    %v58 = vsel %vm56, %v55, 0
    %60 = vmatprep.subr.bf16.mxu0 0
    %61 = vmatpush1.bf16.msra.mxu0 %v50
    %62 = vmatprep.subr.bf16.mxu0 0
    %63 = vmatpush1.bf16.msra.mxu0 0
    %64 = vmatprep.subr.bf16.mxu0 0
    %65 = vmatpush1.bf16.msra.mxu0 0
    %66 = vmatprep.subr.bf16.mxu0 0
    %67 = vmatpush1.bf16.msra.mxu0 0
    %68 = vmatprep.subr.bf16.mxu0 0
    %69 = vmatpush1.bf16.msra.mxu0 0
    %70 = vmatprep.subr.bf16.mxu0 0
    %71 = vmatpush1.bf16.msra.mxu0 0
    %72 = vmatprep.subr.bf16.mxu0 0
    %73 = vmatpush1.bf16.msra.mxu0 0
    %74 = vmatprep.subr.bf16.mxu0 0
    %75 = vmatpush1.bf16.msra.mxu0 0
    %76 = vmatprep.subr.bf16.mxu0 0
    %77 = vmatpush1.bf16.msra.mxu0 0
    %78 = vmatprep.subr.bf16.mxu0 0
    %79 = vmatpush1.bf16.msra.mxu0 0
    %80 = vmatprep.subr.bf16.mxu0 0
    %81 = vmatpush1.bf16.msra.mxu0 0
    %82 = vmatprep.subr.bf16.mxu0 0
    %83 = vmatpush1.bf16.msra.mxu0 0
    %84 = vmatprep.subr.bf16.mxu0 0
    %85 = vmatpush1.bf16.msra.mxu0 0
    %86 = vmatprep.subr.bf16.mxu0 0
    %87 = vmatpush1.bf16.msra.mxu0 0
    %88 = vmatprep.subr.bf16.mxu0 0
    %89 = vmatpush1.bf16.msra.mxu0 0
    %90 = vmatprep.subr.bf16.mxu0 0
    %91 = vmatpush1.bf16.msra.mxu0 0
    %92 = vmatprep.mubr.bf16.mxu0 0
    %93 = vmatmul.mubr.bf16.gmra.mrb[0].mxu0 %v58
    %v94 = vpop.f32.mrb[0].mxu0
    %v95 = vadd.f32 0.0, %v94
    %v96 = vpop.f32.mrb[0].mxu0
    %v97 = vpop.f32.mrb[0].mxu0
    %v98 = vadd.f32 0.0, %v97
    %v99 = vpop.f32.mrb[0].mxu0
    %100 = vdwg.mxu0
    %v101 = vtanh.pop %v95
    %v102 = vtanh.pop %v98
    %v103 = vsub.f32 %v46, %v101
    %v104 = vsub.f32 %v47, %v102
    %s105 = scalar_lea.vmem %s1, 8
    %v106 = vld [vmem:[%s105] sm:$0xf]
    %v107 = vld [vmem:[%s105 + $0x4] sm:$0xf]
    %v108 = vpack.c.bf16 %v104, %v103
    %v111 = vunpack.c.l.b16 %v106
    %v112 = vunpack.c.l.b16 %v107
    %v113 = vpack.c.b16 %v112, %v111
    %v115 = vsel %vm56, %v113, 0
    %117 = vmatprep.subr.bf16.mxu0 0
    %118 = vmatpush1.bf16.msra.mxu0 %v108
    %119 = vmatprep.subr.bf16.mxu0 0
    %120 = vmatpush1.bf16.msra.mxu0 0
    %121 = vmatprep.subr.bf16.mxu0 0
    %122 = vmatpush1.bf16.msra.mxu0 0
    %123 = vmatprep.subr.bf16.mxu0 0
    %124 = vmatpush1.bf16.msra.mxu0 0
    %125 = vmatprep.subr.bf16.mxu0 0
    %126 = vmatpush1.bf16.msra.mxu0 0
    %127 = vmatprep.subr.bf16.mxu0 0
    %128 = vmatpush1.bf16.msra.mxu0 0
    %129 = vmatprep.subr.bf16.mxu0 0
    %130 = vmatpush1.bf16.msra.mxu0 0
    %131 = vmatprep.subr.bf16.mxu0 0
    %132 = vmatpush1.bf16.msra.mxu0 0
    %133 = vmatprep.subr.bf16.mxu0 0
    %134 = vmatpush1.bf16.msra.mxu0 0
    %135 = vmatprep.subr.bf16.mxu0 0
    %136 = vmatpush1.bf16.msra.mxu0 0
    %137 = vmatprep.subr.bf16.mxu0 0
    %138 = vmatpush1.bf16.msra.mxu0 0
    %139 = vmatprep.subr.bf16.mxu0 0
    %140 = vmatpush1.bf16.msra.mxu0 0
    %141 = vmatprep.subr.bf16.mxu0 0
    %142 = vmatpush1.bf16.msra.mxu0 0
    %143 = vmatprep.subr.bf16.mxu0 0
    %144 = vmatpush1.bf16.msra.mxu0 0
    %145 = vmatprep.subr.bf16.mxu0 0
    %146 = vmatpush1.bf16.msra.mxu0 0
    %147 = vmatprep.subr.bf16.mxu0 0
    %148 = vmatpush1.bf16.msra.mxu0 0
    %149 = vmatprep.mubr.bf16.mxu0 0
    %150 = vmatmul.mubr.bf16.gmra.mrb[0].mxu0 %v115
    %v151 = vpop.f32.mrb[0].mxu0
    %v152 = vadd.f32 0.0, %v151
    %v153 = vpop.f32.mrb[0].mxu0
    %v154 = vpop.f32.mrb[0].mxu0
    %v155 = vadd.f32 0.0, %v154
    %v156 = vpop.f32.mrb[0].mxu0
    %157 = vdwg.mxu0
    %v158 = vtanh.pop %v152
    %v159 = vtanh.pop %v155
    %v160 = vsub.f32 %v103, %v158
    %v161 = vsub.f32 %v104, %v159
    %s162 = scalar_lea.vmem %s1, 32
    %v163 = vld [vmem:[%s162] sm:$0xf]
    %v164 = vld [vmem:[%s162 + $0x4] sm:$0xf]
    %v165 = vpack.c.bf16 %v161, %v160
    %v168 = vunpack.c.l.b16 %v163
    %v169 = vunpack.c.l.b16 %v164
    %v170 = vpack.c.b16 %v169, %v168
    %v172 = vsel %vm56, %v170, 0
    %174 = vmatprep.subr.bf16.mxu0 0
    %175 = vmatpush1.bf16.msra.mxu0 %v165
    %176 = vmatprep.subr.bf16.mxu0 0
    %177 = vmatpush1.bf16.msra.mxu0 0
    %178 = vmatprep.subr.bf16.mxu0 0
    %179 = vmatpush1.bf16.msra.mxu0 0
    %180 = vmatprep.subr.bf16.mxu0 0
    %181 = vmatpush1.bf16.msra.mxu0 0
    %182 = vmatprep.subr.bf16.mxu0 0
    %183 = vmatpush1.bf16.msra.mxu0 0
    %184 = vmatprep.subr.bf16.mxu0 0
    %185 = vmatpush1.bf16.msra.mxu0 0
    %186 = vmatprep.subr.bf16.mxu0 0
    %187 = vmatpush1.bf16.msra.mxu0 0
    %188 = vmatprep.subr.bf16.mxu0 0
    %189 = vmatpush1.bf16.msra.mxu0 0
    %190 = vmatprep.subr.bf16.mxu0 0
    %191 = vmatpush1.bf16.msra.mxu0 0
    %192 = vmatprep.subr.bf16.mxu0 0
    %193 = vmatpush1.bf16.msra.mxu0 0
    %194 = vmatprep.subr.bf16.mxu0 0
    %195 = vmatpush1.bf16.msra.mxu0 0
    %196 = vmatprep.subr.bf16.mxu0 0
    %197 = vmatpush1.bf16.msra.mxu0 0
    %198 = vmatprep.subr.bf16.mxu0 0
    %199 = vmatpush1.bf16.msra.mxu0 0
    %200 = vmatprep.subr.bf16.mxu0 0
    %201 = vmatpush1.bf16.msra.mxu0 0
    %202 = vmatprep.subr.bf16.mxu0 0
    %203 = vmatpush1.bf16.msra.mxu0 0
    %204 = vmatprep.subr.bf16.mxu0 0
    %205 = vmatpush1.bf16.msra.mxu0 0
    %206 = vmatprep.mubr.bf16.mxu0 0
    %207 = vmatmul.mubr.bf16.gmra.mrb[0].mxu0 %v172
    %v208 = vpop.f32.mrb[0].mxu0
    %v209 = vadd.f32 0.0, %v208
    %v210 = vpop.f32.mrb[0].mxu0
    %v211 = vpop.f32.mrb[0].mxu0
    %v212 = vadd.f32 0.0, %v211
    %v213 = vpop.f32.mrb[0].mxu0
    %214 = vdwg.mxu0
    %v215 = vsub.f32 %v46, %v209
    %v216 = vsub.f32 %v47, %v212
    %s217 = scalar_lea.vmem %s1, 16
    %v218 = vld [vmem:[%s217] sm:$0xf]
    %v219 = vld [vmem:[%s217 + $0x4] sm:$0xf]
    %v220 = vpack.c.bf16 %v216, %v215
    %v223 = vunpack.c.l.b16 %v218
    %v224 = vunpack.c.l.b16 %v219
    %v225 = vpack.c.b16 %v224, %v223
    %v227 = vsel %vm56, %v225, 0
    %229 = vmatprep.subr.bf16.mxu0 0
    %230 = vmatpush1.bf16.msra.mxu0 %v220
    %231 = vmatprep.subr.bf16.mxu0 0
    %232 = vmatpush1.bf16.msra.mxu0 0
    %233 = vmatprep.subr.bf16.mxu0 0
    %234 = vmatpush1.bf16.msra.mxu0 0
    %235 = vmatprep.subr.bf16.mxu0 0
    %236 = vmatpush1.bf16.msra.mxu0 0
    %237 = vmatprep.subr.bf16.mxu0 0
    %238 = vmatpush1.bf16.msra.mxu0 0
    %239 = vmatprep.subr.bf16.mxu0 0
    %240 = vmatpush1.bf16.msra.mxu0 0
    %241 = vmatprep.subr.bf16.mxu0 0
    %242 = vmatpush1.bf16.msra.mxu0 0
    %243 = vmatprep.subr.bf16.mxu0 0
    %244 = vmatpush1.bf16.msra.mxu0 0
    %245 = vmatprep.subr.bf16.mxu0 0
    %246 = vmatpush1.bf16.msra.mxu0 0
    %247 = vmatprep.subr.bf16.mxu0 0
    %248 = vmatpush1.bf16.msra.mxu0 0
    %249 = vmatprep.subr.bf16.mxu0 0
    %250 = vmatpush1.bf16.msra.mxu0 0
    %251 = vmatprep.subr.bf16.mxu0 0
    %252 = vmatpush1.bf16.msra.mxu0 0
    %253 = vmatprep.subr.bf16.mxu0 0
    %254 = vmatpush1.bf16.msra.mxu0 0
    %255 = vmatprep.subr.bf16.mxu0 0
    %256 = vmatpush1.bf16.msra.mxu0 0
    %257 = vmatprep.subr.bf16.mxu0 0
    %258 = vmatpush1.bf16.msra.mxu0 0
    %259 = vmatprep.subr.bf16.mxu0 0
    %260 = vmatpush1.bf16.msra.mxu0 0
    %261 = vmatprep.mubr.bf16.mxu0 0
    %262 = vmatmul.mubr.bf16.gmra.mrb[0].mxu0 %v227
    %v263 = vpop.f32.mrb[0].mxu0
    %v264 = vadd.f32 0.0, %v263
    %v265 = vpop.f32.mrb[0].mxu0
    %v266 = vpop.f32.mrb[0].mxu0
    %v267 = vadd.f32 0.0, %v266
    %v268 = vpop.f32.mrb[0].mxu0
    %269 = vdwg.mxu0
    %v270 = vtanh.pop %v264
    %v271 = vtanh.pop %v267
    %v272 = vsub.f32 %v215, %v270
    %v273 = vsub.f32 %v216, %v271
    %s274 = scalar_lea.vmem %s1, 24
    %v275 = vld [vmem:[%s274] sm:$0xf]
    %v276 = vld [vmem:[%s274 + $0x4] sm:$0xf]
    %v277 = vpack.c.bf16 %v273, %v272
    %v280 = vunpack.c.l.b16 %v275
    %v281 = vunpack.c.l.b16 %v276
    %v282 = vpack.c.b16 %v281, %v280
    %v284 = vsel %vm56, %v282, 0
    %286 = vmatprep.subr.bf16.mxu0 0
    %287 = vmatpush1.bf16.msra.mxu0 %v277
    %288 = vmatprep.subr.bf16.mxu0 0
    %289 = vmatpush1.bf16.msra.mxu0 0
    %290 = vmatprep.subr.bf16.mxu0 0
    %291 = vmatpush1.bf16.msra.mxu0 0
    %292 = vmatprep.subr.bf16.mxu0 0
    %293 = vmatpush1.bf16.msra.mxu0 0
    %294 = vmatprep.subr.bf16.mxu0 0
    %295 = vmatpush1.bf16.msra.mxu0 0
    %296 = vmatprep.subr.bf16.mxu0 0
    %297 = vmatpush1.bf16.msra.mxu0 0
    %298 = vmatprep.subr.bf16.mxu0 0
    %299 = vmatpush1.bf16.msra.mxu0 0
    %300 = vmatprep.subr.bf16.mxu0 0
    %301 = vmatpush1.bf16.msra.mxu0 0
    %302 = vmatprep.subr.bf16.mxu0 0
    %303 = vmatpush1.bf16.msra.mxu0 0
    %304 = vmatprep.subr.bf16.mxu0 0
    %305 = vmatpush1.bf16.msra.mxu0 0
    %306 = vmatprep.subr.bf16.mxu0 0
    %307 = vmatpush1.bf16.msra.mxu0 0
    %308 = vmatprep.subr.bf16.mxu0 0
    %309 = vmatpush1.bf16.msra.mxu0 0
    %310 = vmatprep.subr.bf16.mxu0 0
    %311 = vmatpush1.bf16.msra.mxu0 0
    %312 = vmatprep.subr.bf16.mxu0 0
    %313 = vmatpush1.bf16.msra.mxu0 0
    %314 = vmatprep.subr.bf16.mxu0 0
    %315 = vmatpush1.bf16.msra.mxu0 0
    %316 = vmatprep.subr.bf16.mxu0 0
    %317 = vmatpush1.bf16.msra.mxu0 0
    %318 = vmatprep.mubr.bf16.mxu0 0
    %319 = vmatmul.mubr.bf16.gmra.mrb[0].mxu0 %v284
    %v320 = vpop.f32.mrb[0].mxu0
    %v321 = vadd.f32 0.0, %v320
    %v322 = vpop.f32.mrb[0].mxu0
    %v323 = vpop.f32.mrb[0].mxu0
    %v324 = vadd.f32 0.0, %v323
    %v325 = vpop.f32.mrb[0].mxu0
    %326 = vdwg.mxu0
    %v327 = vtanh.pop %v321
    %v328 = vtanh.pop %v324
    %v329 = vsub.f32 %v272, %v327
    %v330 = vsub.f32 %v273, %v328
    %v331 = vld [vmem:[#allocation2] sm:$0xf]
    %v333 = vsel %vm56, %v331, 0
    %335 = vmatprep.subr.bf16.mxu0 0
    %336 = vmatpush1.bf16.msra.mxu0 %v220
    %337 = vmatprep.subr.bf16.mxu0 0
    %338 = vmatpush1.bf16.msra.mxu0 0
    %339 = vmatprep.subr.bf16.mxu0 0
    %340 = vmatpush1.bf16.msra.mxu0 0
    %341 = vmatprep.subr.bf16.mxu0 0
    %342 = vmatpush1.bf16.msra.mxu0 0
    %343 = vmatprep.subr.bf16.mxu0 0
    %344 = vmatpush1.bf16.msra.mxu0 0
    %345 = vmatprep.subr.bf16.mxu0 0
    %346 = vmatpush1.bf16.msra.mxu0 0
    %347 = vmatprep.subr.bf16.mxu0 0
    %348 = vmatpush1.bf16.msra.mxu0 0
    %349 = vmatprep.subr.bf16.mxu0 0
    %350 = vmatpush1.bf16.msra.mxu0 0
    %351 = vmatprep.subr.bf16.mxu0 0
    %352 = vmatpush1.bf16.msra.mxu0 0
    %353 = vmatprep.subr.bf16.mxu0 0
    %354 = vmatpush1.bf16.msra.mxu0 0
    %355 = vmatprep.subr.bf16.mxu0 0
    %356 = vmatpush1.bf16.msra.mxu0 0
    %357 = vmatprep.subr.bf16.mxu0 0
    %358 = vmatpush1.bf16.msra.mxu0 0
    %359 = vmatprep.subr.bf16.mxu0 0
    %360 = vmatpush1.bf16.msra.mxu0 0
    %361 = vmatprep.subr.bf16.mxu0 0
    %362 = vmatpush1.bf16.msra.mxu0 0
    %363 = vmatprep.subr.bf16.mxu0 0
    %364 = vmatpush1.bf16.msra.mxu0 0
    %365 = vmatprep.subr.bf16.mxu0 0
    %366 = vmatpush1.bf16.msra.mxu0 0
    %367 = vmatprep.mubr.bf16.mxu0 0
    %368 = vmatmul.mubr.bf16.gmra.mrb[0].mxu0 %v333
    %v369 = vpop.f32.mrb[0].mxu0
    %v370 = vadd.f32 0.0, %v369
    %v371 = vpop.f32.mrb[0].mxu0
    %v372 = vpop.f32.mrb[0].mxu0
    %v373 = vpop.f32.mrb[0].mxu0
    %374 = vdwg.mxu0
    %s375 = scalar_lea.vmem [#allocation2], 4
    %v376 = vld [vmem:[%s375] sm:$0xf]
    %v377 = vpack.c.bf16 %v330, %v329
    %v379 = vsel %vm56, %v376, 0
    %381 = vmatprep.subr.bf16.mxu0 0
    %382 = vmatpush1.bf16.msra.mxu0 %v377
    %383 = vmatprep.subr.bf16.mxu0 0
    %384 = vmatpush1.bf16.msra.mxu0 0
    %385 = vmatprep.subr.bf16.mxu0 0
    %386 = vmatpush1.bf16.msra.mxu0 0
    %387 = vmatprep.subr.bf16.mxu0 0
    %388 = vmatpush1.bf16.msra.mxu0 0
    %389 = vmatprep.subr.bf16.mxu0 0
    %390 = vmatpush1.bf16.msra.mxu0 0
    %391 = vmatprep.subr.bf16.mxu0 0
    %392 = vmatpush1.bf16.msra.mxu0 0
    %393 = vmatprep.subr.bf16.mxu0 0
    %394 = vmatpush1.bf16.msra.mxu0 0
    %395 = vmatprep.subr.bf16.mxu0 0
    %396 = vmatpush1.bf16.msra.mxu0 0
    %397 = vmatprep.subr.bf16.mxu0 0
    %398 = vmatpush1.bf16.msra.mxu0 0
    %399 = vmatprep.subr.bf16.mxu0 0
    %400 = vmatpush1.bf16.msra.mxu0 0
    %401 = vmatprep.subr.bf16.mxu0 0
    %402 = vmatpush1.bf16.msra.mxu0 0
    %403 = vmatprep.subr.bf16.mxu0 0
    %404 = vmatpush1.bf16.msra.mxu0 0
    %405 = vmatprep.subr.bf16.mxu0 0
    %406 = vmatpush1.bf16.msra.mxu0 0
    %407 = vmatprep.subr.bf16.mxu0 0
    %408 = vmatpush1.bf16.msra.mxu0 0
    %409 = vmatprep.subr.bf16.mxu0 0
    %410 = vmatpush1.bf16.msra.mxu0 0
    %411 = vmatprep.subr.bf16.mxu0 0
    %412 = vmatpush1.bf16.msra.mxu0 0
    %413 = vmatprep.mubr.bf16.mxu0 0
    %414 = vmatmul.mubr.bf16.gmra.mrb[0].mxu0 %v379
    %v415 = vpop.f32.mrb[0].mxu0
    %v416 = vadd.f32 0.0, %v415
    %v417 = vpop.f32.mrb[0].mxu0
    %v418 = vpop.f32.mrb[0].mxu0
    %v419 = vpop.f32.mrb[0].mxu0
    %420 = vdwg.mxu0
    %v421 = vsub.f32 %v370, %v416
    %v422 = vld [vmem:[%s3] sm:$0xff]
    %424 = vset.pattern.permute.xlu0 0
    %425 = vperm.xlu0 %424, %v422
    %v426 = vpop.permute.xlu0 %425
    %v428 = vadd.f32 %v426, %v45
    %v429 = vadd.f32 %v421, %v428
    %430 = vst.msk [vmem:[%s4] sm:$0xff] %vm34, %v429
    // Predicated region
    $region22: #{sfft_forward.1} parent=1 // pred_check
      _
    $region23: #{sfft_forward.1} parent=1 // pred_check_branch
      %432 = sbr.rel (0) target = $region25
    $region24: #{sfft_forward.1} parent=1 // pred_region
      _
    $region25: #{sfft_forward.1} parent=1 // pred_fallthru
      _
    // Predicated region
    $region26: #{sfft_forward.1} parent=1 // pred_check
      _
    $region27: #{sfft_forward.1} parent=1 // pred_check_branch
      %434 = sbr.rel (0) target = $region29
    $region28: #{sfft_forward.1} parent=1 // pred_region
      _
    $region29: #{sfft_forward.1} parent=1 // pred_fallthru
      _
    %435 = vsyncpa [#allocation3], 1

</llo_original>
